<compile_context>
chip_gen: v5e
topology: v5e:2x2
jax: 0.10.0
libtpu: 0.0.40
codegen_flags: <defaults>
</compile_context>

<pallas_src>
import math
import jax
import jax.numpy as jnp
from jax.experimental import pallas as pl
from jax.experimental.pallas import tpu as pltpu

_HEAD_LANES = 128      # packed head/output width (min unmasked-store lane width)


def _round_up(n, m):
    return ((n + m - 1) // m) * m


def _choose_batch_tile(batch, max_tile=1024):
    """Batch tile: multiple of 8, capped at max_tile, >=2 grid steps when possible
    so v7x's two TensorCores both get work on the 'parallel' batch axis."""
    b8 = _round_up(max(batch, 1), 8)
    if b8 <= 8:
        return b8
    return min(_round_up((b8 + 1) // 2, 8), max_tile)


# ---------------------------------------------------------------------------
# Fused kernel: both policies, both towers, all layers, in one body.
# ---------------------------------------------------------------------------
def _fused_policy_instinct_kernel(x_ref, w1_ref, wl_ref, wh_ref, b_ref, out_ref):
    """One batch tile through both policies' MLPs + heads.

    x_ref   : (TB, IN_PAD)        f32 obs in lanes [0:obs_dim], rest zeros
    w1_ref  : (IN_PAD, HT)        bf16 fused layer-1 weight (4 towers side by side)
    wl_ref  : (2, HT, HT)         bf16 block-diagonal layer-2 / layer-3 weights
    wh_ref  : (HT, 128)           bf16 fused head (critic_linear + fc_mean, both policies)
    b_ref   : (8, HT)             f32, rows 0..2 layer biases, row 3 lanes[:128] head bias
    out_ref : (TB, 128)           lane 0: policy value, lanes 1..A: policy mean,
                                  lane LI: instinct value, lanes LI+1..LI+A: instinct mean
    """
    f32, bf16 = jnp.float32, jnp.bfloat16
    # bf16 operands on the MXU, f32 accumulate, f32 elementwise (tanh / bias adds).
    x = x_ref[...].astype(bf16)
    h = jnp.tanh(jnp.dot(x, w1_ref[...], preferred_element_type=f32) + b_ref[0:1, :])
    h = jnp.tanh(jnp.dot(h.astype(bf16), wl_ref[0], preferred_element_type=f32)
                 + b_ref[1:2, :])
    h = jnp.tanh(jnp.dot(h.astype(bf16), wl_ref[1], preferred_element_type=f32)
                 + b_ref[2:3, :])
    out_ref[...] = (jnp.dot(h.astype(bf16), wh_ref[...], preferred_element_type=f32)
                    + b_ref[3:4, :_HEAD_LANES])


def fused_forward_pallas(inputs, w1, wl, wh, b_all, *, max_batch_tile=1024):
    """Runs the fused policy+instinct MLP forward. Returns packed (B, 128) slab."""
    B, in_dim = inputs.shape
    in_pad, HT = w1.shape
    head = wh.shape[-1]

    TB = _choose_batch_tile(B, max_batch_tile)
    B_pad = _round_up(B, TB)

    x = jnp.zeros((B_pad, in_pad), jnp.float32)
    x = x.at[:B, :in_dim].set(inputs.astype(jnp.float32))

    out = pl.pallas_call(
        _fused_policy_instinct_kernel,
        out_shape=jax.ShapeDtypeStruct((B_pad, head), jnp.float32),
        grid=(B_pad // TB,),
        in_specs=[
            pl.BlockSpec((TB, in_pad), lambda i: (i, 0)),     # batch-tiled x
            pl.BlockSpec(w1.shape, lambda i: (0, 0)),         # weights: grid-invariant
            pl.BlockSpec(wl.shape, lambda i: (0, 0, 0)),      #  -> no per-step re-DMA
            pl.BlockSpec(wh.shape, lambda i: (0, 0)),
            pl.BlockSpec(b_all.shape, lambda i: (0, 0)),
        ],
        out_specs=pl.BlockSpec((TB, head), lambda i: (i, 0)), # lane-dense 128-wide slab
        compiler_params=pltpu.CompilerParams(
            dimension_semantics=("parallel",)),
    )(x, w1, wl, wh, b_all)
    return out[:B]


# ---------------------------------------------------------------------------
# Parameter packing: 2 policies x (2 towers x 3 Linear + 1 head) -> 4 arrays.
# ---------------------------------------------------------------------------
def pack_policy_with_instinct_params(policy_params, instinct_params,
                                     obs_dim, act_dim, hidden):
    H, A = hidden, act_dim
    HT = _round_up(4 * H, 128)            # fused hidden width (4 towers)
    IN_PAD = _round_up(obs_dim, 128)      # layer-1 input lanes
    LANE_I = 1 + A                        # instinct head offset in output slab

    assert 4 * H <= HT and 2 * (1 + A) <= _HEAD_LANES and obs_dim <= IN_PAD

    # tower column offsets in the fused hidden dim
    off_pc, off_pa, off_ic, off_ia = 0, H, 2 * H, 3 * H

    # layer 1: only the first obs_dim input rows carry data; the instinct network's
    # extra action inputs are always zeros in act(), so those weight rows drop out.
    w1 = jnp.zeros((IN_PAD, HT), jnp.float32)
    w1 = w1.at[:obs_dim, off_pc:off_pc + H].set(policy_params['wc1'])
    w1 = w1.at[:obs_dim, off_pa:off_pa + H].set(policy_params['wa1'])
    w1 = w1.at[:obs_dim, off_ic:off_ic + H].set(instinct_params['wc1'][:obs_dim])
    w1 = w1.at[:obs_dim, off_ia:off_ia + H].set(instinct_params['wa1'][:obs_dim])

    def block_diag(wc_p, wa_p, wc_i, wa_i):
        w = jnp.zeros((HT, HT), jnp.float32)
        w = w.at[off_pc:off_pc + H, off_pc:off_pc + H].set(wc_p)
        w = w.at[off_pa:off_pa + H, off_pa:off_pa + H].set(wa_p)
        w = w.at[off_ic:off_ic + H, off_ic:off_ic + H].set(wc_i)
        w = w.at[off_ia:off_ia + H, off_ia:off_ia + H].set(wa_i)
        return w

    w2 = block_diag(policy_params['wc2'], policy_params['wa2'],
                    instinct_params['wc2'], instinct_params['wa2'])
    w3 = block_diag(policy_params['wc3'], policy_params['wa3'],
                    instinct_params['wc3'], instinct_params['wa3'])
    wl = jnp.stack([w2, w3], axis=0)                      # (2, HT, HT)

    # heads: critic_linear + DiagGaussian fc_mean of both policies, one 128-wide matmul
    wh = jnp.zeros((HT, _HEAD_LANES), jnp.float32)
    wh = wh.at[off_pc:off_pc + H, 0:1].set(policy_params['wv'])
    wh = wh.at[off_pa:off_pa + H, 1:1 + A].set(policy_params['wm'])
    wh = wh.at[off_ic:off_ic + H, LANE_I:LANE_I + 1].set(instinct_params['wv'])
    wh = wh.at[off_ia:off_ia + H, LANE_I + 1:LANE_I + 1 + A].set(instinct_params['wm'])

    b_all = jnp.zeros((8, HT), jnp.float32)
    for row, (kc, ka) in enumerate([('bc1', 'ba1'), ('bc2', 'ba2'), ('bc3', 'ba3')]):
        b_all = b_all.at[row, off_pc:off_pc + H].set(policy_params[kc].reshape(-1))
        b_all = b_all.at[row, off_pa:off_pa + H].set(policy_params[ka].reshape(-1))
        b_all = b_all.at[row, off_ic:off_ic + H].set(instinct_params[kc].reshape(-1))
        b_all = b_all.at[row, off_ia:off_ia + H].set(instinct_params[ka].reshape(-1))
    b_all = b_all.at[3, 0:1].set(policy_params['bv'].reshape(-1))
    b_all = b_all.at[3, 1:1 + A].set(policy_params['bm'].reshape(-1))
    b_all = b_all.at[3, LANE_I:LANE_I + 1].set(instinct_params['bv'].reshape(-1))
    b_all = b_all.at[3, LANE_I + 1:LANE_I + 1 + A].set(instinct_params['bm'].reshape(-1))

    # bf16 weights (MXU operands); biases stay f32 (added to the f32 accumulator).
    W1 = w1.astype(jnp.bfloat16)
    WL = wl.astype(jnp.bfloat16)
    WH = wh.astype(jnp.bfloat16)

    meta = {'obs_dim': obs_dim, 'act_dim': act_dim, 'hidden': H,
            'HT': HT, 'in_pad': IN_PAD, 'head_lanes': _HEAD_LANES,
            'lane_ins': LANE_I}
    return W1, WL, WH, b_all, meta


# ---------------------------------------------------------------------------
# PolicyWithInstinct.act (deterministic path), instinct_on hard-coded False.
# ---------------------------------------------------------------------------
def policy_with_instinct_act(inputs, rnn_hxs, i_rnn_hxs, masks, i_masks,
                             packed, init_log_std):
    del masks, i_masks          # non-recurrent base: masks unused
    W1, WL, WH, b_all, meta = packed
    A = meta['act_dim']
    LI = meta['lane_ins']
    B = inputs.shape[0]

    out = fused_forward_pallas(inputs, W1, WL, WH, b_all)   # (B, 128) packed slab

    value = out[:, 0:1]
    mean = out[:, 1:1 + A]
    i_value = out[:, LI:LI + 1]
    i_mean = out[:, LI + 1:LI + 1 + A]

    action = mean               # deterministic mode of DiagGaussian
    i_action = i_mean

    # Closed-form FixedNormal.log_probs when action == mean and logstd == init_log_std:
    # per-dim logp = -log_std - 0.5*ln(2*pi), summed over A action dims.
    logp_const = float(A) * (-float(init_log_std) - 0.5 * math.log(2.0 * math.pi))
    action_log_probs = jnp.full((B, 1), logp_const, jnp.float32)
    i_log_probs = jnp.full((B, 1), logp_const, jnp.float32)

    instinct_inputs = jnp.concatenate([inputs, jnp.zeros_like(action)], axis=1)
    final_action = action       # instinct_on = False

    return ((value, action, action_log_probs, rnn_hxs),
            (i_value, i_action, i_log_probs, i_rnn_hxs, instinct_inputs),
            final_action)


# ---------------------------------------------------------------------------
# Param init (custom_weight_init: every nn.Linear weight & bias ~ U(-0.3, 0.3))
# Weights are stored (in, out), i.e. PyTorch weight.T, so y = x @ W + b.
# ---------------------------------------------------------------------------
def make_policy_params(key, in_dim, hidden, out_dim):
    ks = jax.random.split(key, 16)

    def u(k, shape):
        return jax.random.uniform(k, shape, jnp.float32, -0.3, 0.3)

    return {
        'wc1': u(ks[0], (in_dim, hidden)), 'bc1': u(ks[1], (1, hidden)),
        'wc2': u(ks[2], (hidden, hidden)), 'bc2': u(ks[3], (1, hidden)),
        'wc3': u(ks[4], (hidden, hidden)), 'bc3': u(ks[5], (1, hidden)),
        'wa1': u(ks[6], (in_dim, hidden)), 'ba1': u(ks[7], (1, hidden)),
        'wa2': u(ks[8], (hidden, hidden)), 'ba2': u(ks[9], (1, hidden)),
        'wa3': u(ks[10], (hidden, hidden)), 'ba3': u(ks[11], (1, hidden)),
        'wv': u(ks[12], (hidden, 1)), 'bv': u(ks[13], (1, 1)),
        'wm': u(ks[14], (hidden, out_dim)), 'bm': u(ks[15], (1, out_dim)),
    }


def _ref_policy_forward(x, p, matmul_dtype=jnp.float32):
    """Pure-JAX reference (one Policy): MLPBase towers + critic_linear + fc_mean.

    matmul_dtype=bf16 mirrors the kernel's math (bf16 operands, f32 accumulate,
    f32 elementwise); matmul_dtype=f32 is the exact PyTorch-equivalent reference.
    """
    prec = jax.lax.Precision.HIGHEST if matmul_dtype == jnp.float32 else None

    def lin(h, w, b):
        return jnp.dot(h.astype(matmul_dtype), w.astype(matmul_dtype),
                       preferred_element_type=jnp.float32, precision=prec) + b

    hc = jnp.tanh(lin(x, p['wc1'], p['bc1']))
    hc = jnp.tanh(lin(hc, p['wc2'], p['bc2']))
    hc = jnp.tanh(lin(hc, p['wc3'], p['bc3']))
    value = lin(hc, p['wv'], p['bv'])
    ha = jnp.tanh(lin(x, p['wa1'], p['ba1']))
    ha = jnp.tanh(lin(ha, p['wa2'], p['ba2']))
    ha = jnp.tanh(lin(ha, p['wa3'], p['ba3']))
    mean = lin(ha, p['wm'], p['bm'])
    return value, mean


if __name__ == "__main__":
    # Small shapes consistent with the module: 1-D obs -> MLPBase, Box action space.
    batch = 4
    obs_dim = 8
    act_dim = 4
    hidden = 64          # base_kwargs={'hidden_size': 64}
    init_log_std = -0.5

    key = jax.random.PRNGKey(0)
    k_in, k_pol, k_ins = jax.random.split(key, 3)

    inputs = jax.random.normal(k_in, (batch, obs_dim), jnp.float32)
    rnn_hxs = jnp.zeros((batch, 1), jnp.float32)     # non-recurrent: size 1
    i_rnn_hxs = jnp.zeros((batch, 1), jnp.float32)
    masks = jnp.ones((batch, 1), jnp.float32)
    i_masks = jnp.ones((batch, 1), jnp.float32)

    policy_params = make_policy_params(k_pol, obs_dim, hidden, act_dim)
    instinct_params = make_policy_params(k_ins, obs_dim + act_dim, hidden, act_dim)

    packed = pack_policy_with_instinct_params(
        policy_params, instinct_params, obs_dim, act_dim, hidden)

    (pol_out, ins_out, final_action) = policy_with_instinct_act(
        inputs, rnn_hxs, i_rnn_hxs, masks, i_masks, packed, init_log_std)

    jax.block_until_ready(final_action)
    jax.block_until_ready(pol_out)
    jax.block_until_ready(ins_out)

    value, action, action_log_probs, _ = pol_out
    i_value, i_outputs, i_log_probs, _, instinct_inputs = ins_out

    # Shape checks
    assert value.shape == (batch, 1)
    assert action.shape == (batch, act_dim)
    assert action_log_probs.shape == (batch, 1)
    assert i_value.shape == (batch, 1)
    assert i_outputs.shape == (batch, act_dim)
    assert i_log_probs.shape == (batch, 1)
    assert instinct_inputs.shape == (batch, obs_dim + act_dim)
    assert final_action.shape == (batch, act_dim)

    # Numerical checks.
    ref_ins_in = jnp.concatenate(
        [inputs, jnp.zeros((batch, act_dim), jnp.float32)], axis=1)

    # (1) Tight check against a bf16-operand reference that mirrors the kernel math.
    bref_v_pol, bref_m_pol = _ref_policy_forward(inputs, policy_params, jnp.bfloat16)
    bref_v_ins, bref_m_ins = _ref_policy_forward(ref_ins_in, instinct_params, jnp.bfloat16)
    assert jnp.allclose(value, bref_v_pol, atol=5e-3, rtol=5e-3)
    assert jnp.allclose(action, bref_m_pol, atol=5e-3, rtol=5e-3)
    assert jnp.allclose(i_value, bref_v_ins, atol=5e-3, rtol=5e-3)
    assert jnp.allclose(i_outputs, bref_m_ins, atol=5e-3, rtol=5e-3)

    # (2) Loose check against the exact f32 reference (bf16 operand error budget).
    ref_v_pol, ref_m_pol = _ref_policy_forward(inputs, policy_params, jnp.float32)
    ref_v_ins, ref_m_ins = _ref_policy_forward(ref_ins_in, instinct_params, jnp.float32)
    assert jnp.allclose(value, ref_v_pol, atol=5e-2, rtol=5e-2)
    assert jnp.allclose(action, ref_m_pol, atol=5e-2, rtol=5e-2)
    assert jnp.allclose(i_value, ref_v_ins, atol=5e-2, rtol=5e-2)
    assert jnp.allclose(i_outputs, ref_m_ins, atol=5e-2, rtol=5e-2)

    print("KERNEL_OK")
</pallas_src>

<mosaic_0001>
module attributes {stable_mosaic.version = 11 : i64} {
  func.func @_fused_policy_instinct_kernel(%arg0: i32, %arg1: memref<8x128xf32, #tpu.memory_space<vmem>>, %arg2: memref<128x256xbf16, #tpu.memory_space<vmem>>, %arg3: memref<2x256x256xbf16, #tpu.memory_space<vmem>>, %arg4: memref<256x128xbf16, #tpu.memory_space<vmem>>, %arg5: memref<8x256xf32, #tpu.memory_space<vmem>>, %arg6: memref<8x128xf32, #tpu.memory_space<vmem>>) attributes {dimension_semantics = [#tpu.dimension_semantics<parallel>], iteration_bounds = array<i64: 1>, scalar_prefetch = 0 : i64, scratch_operands = 0 : i64, tpu.core_type = #tpu.core_type<tc>, window_params = [{transform_indices = @transform_0, window_bounds = array<i64: 8, 128>}, {pipeline_mode = #tpu.pipeline_mode<synchronous>, transform_indices = @transform_1, window_bounds = array<i64: 128, 256>}, {pipeline_mode = #tpu.pipeline_mode<synchronous>, transform_indices = @transform_2, window_bounds = array<i64: 2, 256, 256>}, {pipeline_mode = #tpu.pipeline_mode<synchronous>, transform_indices = @transform_3, window_bounds = array<i64: 256, 128>}, {pipeline_mode = #tpu.pipeline_mode<synchronous>, transform_indices = @transform_4, window_bounds = array<i64: 8, 256>}, {transform_indices = @transform_5, window_bounds = array<i64: 8, 128>}]} {
    %c0 = arith.constant 0 : index
    %c0_0 = arith.constant 0 : index
    %0 = vector.load %arg1[%c0, %c0_0] : memref<8x128xf32, #tpu.memory_space<vmem>>, vector<8x128xf32>
    %1 = arith.truncf %0 : vector<8x128xf32> to vector<8x128xbf16>
    %c0_1 = arith.constant 0 : index
    %c0_2 = arith.constant 0 : index
    %2 = vector.load %arg2[%c0_1, %c0_2] : memref<128x256xbf16, #tpu.memory_space<vmem>>, vector<128x256xbf16>
    %cst = arith.constant dense<0.000000e+00> : vector<8x256xf32>
    %3 = tpu.matmul %1, %2, %cst {dimension_numbers = #tpu.dot_dimension_numbers<[1], [0], [0], [1], [0, 0, 1, 1], [], []>} : vector<8x128xbf16>, vector<128x256xbf16>, vector<8x256xf32> -> vector<8x256xf32>
    %c0_3 = arith.constant 0 : index
    %c0_4 = arith.constant 0 : index
    %4 = vector.load %arg5[%c0_3, %c0_4] : memref<8x256xf32, #tpu.memory_space<vmem>>, vector<1x256xf32>
    %5 = vector.broadcast %4 : vector<1x256xf32> to vector<8x256xf32>
    %6 = arith.addf %3, %5 : vector<8x256xf32>
    %7 = math.tanh %6 : vector<8x256xf32>
    %8 = arith.truncf %7 : vector<8x256xf32> to vector<8x256xbf16>
    %c0_5 = arith.constant 0 : index
    %c0_6 = arith.constant 0 : index
    %c0_7 = arith.constant 0 : index
    %9 = vector.load %arg3[%c0_5, %c0_6, %c0_7] : memref<2x256x256xbf16, #tpu.memory_space<vmem>>, vector<1x256x256xbf16>
    %10 = vector.shape_cast %9 : vector<1x256x256xbf16> to vector<256x256xbf16>
    %cst_8 = arith.constant dense<0.000000e+00> : vector<8x256xf32>
    %11 = tpu.matmul %8, %10, %cst_8 {dimension_numbers = #tpu.dot_dimension_numbers<[1], [0], [0], [1], [0, 0, 1, 1], [], []>} : vector<8x256xbf16>, vector<256x256xbf16>, vector<8x256xf32> -> vector<8x256xf32>
    %c1 = arith.constant 1 : index
    %c0_9 = arith.constant 0 : index
    %12 = vector.load %arg5[%c1, %c0_9] : memref<8x256xf32, #tpu.memory_space<vmem>>, vector<1x256xf32>
    %13 = vector.broadcast %12 : vector<1x256xf32> to vector<8x256xf32>
    %14 = arith.addf %11, %13 : vector<8x256xf32>
    %15 = math.tanh %14 : vector<8x256xf32>
    %16 = arith.truncf %15 : vector<8x256xf32> to vector<8x256xbf16>
    %c1_10 = arith.constant 1 : index
    %c0_11 = arith.constant 0 : index
    %c0_12 = arith.constant 0 : index
    %17 = vector.load %arg3[%c1_10, %c0_11, %c0_12] : memref<2x256x256xbf16, #tpu.memory_space<vmem>>, vector<1x256x256xbf16>
    %18 = vector.shape_cast %17 : vector<1x256x256xbf16> to vector<256x256xbf16>
    %cst_13 = arith.constant dense<0.000000e+00> : vector<8x256xf32>
    %19 = tpu.matmul %16, %18, %cst_13 {dimension_numbers = #tpu.dot_dimension_numbers<[1], [0], [0], [1], [0, 0, 1, 1], [], []>} : vector<8x256xbf16>, vector<256x256xbf16>, vector<8x256xf32> -> vector<8x256xf32>
    %c2 = arith.constant 2 : index
    %c0_14 = arith.constant 0 : index
    %20 = vector.load %arg5[%c2, %c0_14] : memref<8x256xf32, #tpu.memory_space<vmem>>, vector<1x256xf32>
    %21 = vector.broadcast %20 : vector<1x256xf32> to vector<8x256xf32>
    %22 = arith.addf %19, %21 : vector<8x256xf32>
    %23 = math.tanh %22 : vector<8x256xf32>
    %24 = arith.truncf %23 : vector<8x256xf32> to vector<8x256xbf16>
    %c0_15 = arith.constant 0 : index
    %c0_16 = arith.constant 0 : index
    %25 = vector.load %arg4[%c0_15, %c0_16] : memref<256x128xbf16, #tpu.memory_space<vmem>>, vector<256x128xbf16>
    %cst_17 = arith.constant dense<0.000000e+00> : vector<8x128xf32>
    %26 = tpu.matmul %24, %25, %cst_17 {dimension_numbers = #tpu.dot_dimension_numbers<[1], [0], [0], [1], [0, 0, 1, 1], [], []>} : vector<8x256xbf16>, vector<256x128xbf16>, vector<8x128xf32> -> vector<8x128xf32>
    %c3 = arith.constant 3 : index
    %c0_18 = arith.constant 0 : index
    %27 = vector.load %arg5[%c3, %c0_18] : memref<8x256xf32, #tpu.memory_space<vmem>>, vector<1x128xf32>
    %28 = vector.broadcast %27 : vector<1x128xf32> to vector<8x128xf32>
    %29 = arith.addf %26, %28 : vector<8x128xf32>
    %c0_19 = arith.constant 0 : index
    %c0_20 = arith.constant 0 : index
    %30 = vector.load %arg6[%c0_19, %c0_20] : memref<8x128xf32, #tpu.memory_space<vmem>>, vector<8x128xf32>
    tpu.vector_store %arg6[%c0_19, %c0_20], %29 {strides = array<i32>} : memref<8x128xf32, #tpu.memory_space<vmem>>, vector<8x128xf32>,
    return
  }
  func.func @transform_0(%arg0: i32) -> (i32, i32) {
    %c0_i32 = arith.constant 0 : i32
    %c0_i32_0 = arith.constant 0 : i32
    return %arg0, %c0_i32 : i32, i32
  }
  func.func @transform_1(%arg0: i32) -> (i32, i32) {
    %c0_i32 = arith.constant 0 : i32
    %c0_i32_0 = arith.constant 0 : i32
    %c0_i32_1 = arith.constant 0 : i32
    return %c0_i32, %c0_i32_0 : i32, i32
  }
  func.func @transform_2(%arg0: i32) -> (i32, i32, i32) {
    %c0_i32 = arith.constant 0 : i32
    %c0_i32_0 = arith.constant 0 : i32
    %c0_i32_1 = arith.constant 0 : i32
    %c0_i32_2 = arith.constant 0 : i32
    return %c0_i32, %c0_i32_0, %c0_i32_1 : i32, i32, i32
  }
  func.func @transform_3(%arg0: i32) -> (i32, i32) {
    %c0_i32 = arith.constant 0 : i32
    %c0_i32_0 = arith.constant 0 : i32
    %c0_i32_1 = arith.constant 0 : i32
    return %c0_i32, %c0_i32_0 : i32, i32
  }
  func.func @transform_4(%arg0: i32) -> (i32, i32) {
    %c0_i32 = arith.constant 0 : i32
    %c0_i32_0 = arith.constant 0 : i32
    %c0_i32_1 = arith.constant 0 : i32
    return %c0_i32, %c0_i32_0 : i32, i32
  }
  func.func @transform_5(%arg0: i32) -> (i32, i32) {
    %c0_i32 = arith.constant 0 : i32
    %c0_i32_0 = arith.constant 0 : i32
    return %arg0, %c0_i32 : i32, i32
  }
}

</mosaic_0001>

<llo_original>
// kernel: tpu_custom_call.1
$region0: #{tpu_custom_call.1}
  #allocation0 [shape = 'u32[]', space=smem, size = 0x4, offset = 0x4, fixed_abs, tag = 'smem constant byte address 0x4 - core index']
  #allocation1 [shape = 'u32[72,128]{1,0:T(1,128)}', space=vmem, size = 0x9000, scoped, tag = 'internal scratch']
  %s0 = inlined_call_operand.hbm [shape: f32[8,128], index: 0, kind: input, shape index: {}]
  %s1 = inlined_call_operand.hbm [shape: bf16[128,256], index: 1, kind: input, shape index: {}]
  %s2 = inlined_call_operand.hbm [shape: bf16[2,256,256], index: 2, kind: input, shape index: {}]
  %s3 = inlined_call_operand.hbm [shape: bf16[256,128], index: 3, kind: input, shape index: {}]
  %s4 = inlined_call_operand.hbm [shape: f32[8,256], index: 4, kind: input, shape index: {}]
  %s5 = inlined_call_operand.hbm [shape: f32[8,128], index: 5, kind: output, shape index: {}]
  %s6 = sld [smem:[#allocation0]]
  $region50: #{tpu_custom_call.1} parent=0
    _
  %s8 = ssub.s32 1, %s6
  %s9 = scalar_select 0, %s8, %s6
  $region1: #{tpu_custom_call.1} parent=0
    #allocation2 [shape = 'u8[4096]{0}', space=vmem, size = 0x1000, scoped, tag = 'input window, operand 0, single buffered']
    #allocation3 [shape = 's32[1]{0}', space=sflag, size = 0x4, scoped, tag = 'scoped memory for tpu_custom_call.1']
    #allocation4 [shape = 's32[1]{0}', space=sflag, size = 0x4, scoped, tag = 'scoped memory for tpu_custom_call.1']
    #allocation5 [shape = 'u8[65536]{0}', space=vmem, size = 0x10000, scoped, tag = 'input window, operand 1, single buffered']
    #allocation6 [shape = 's32[1]{0}', space=sflag, size = 0x4, scoped, tag = 'scoped memory for tpu_custom_call.1']
    #allocation7 [shape = 'u8[262144]{0}', space=vmem, size = 0x40000, scoped, tag = 'input window, operand 2, single buffered']
    #allocation8 [shape = 'u8[65536]{0}', space=vmem, size = 0x10000, scoped, tag = 'input window, operand 3, single buffered']
    #allocation9 [shape = 's32[1]{0}', space=sflag, size = 0x4, scoped, tag = 'scoped memory for tpu_custom_call.1']
    #allocation10 [shape = 'u8[8192]{0}', space=vmem, size = 0x2000, scoped, tag = 'input window, operand 4, single buffered']
    #allocation11 [shape = 'u8[4096]{0}', space=vmem, size = 0x1000, scoped, tag = 'output window, operand 0, single buffered']
    %10 = vsyncpa [#allocation3], 0
    %11 = vsyncpa [#allocation6], 0
    %12 = vsyncpa [#allocation9], 0
    %13 = vsyncpa [#allocation4], 0
    // Predicated region
    $region2: #{tpu_custom_call.1} parent=1 // pred_check
      _
    $region3: #{tpu_custom_call.1} parent=1 // pred_check_branch
      %15 = sbr.rel (0) target = $region5
    $region4: #{tpu_custom_call.1} parent=1 // pred_region
      %17 = vsyncadd [#allocation3], 0
      %s19 = sshll.u32 %s0, 4
      %s20 = int_to_ptr.hbm [resolvable:$true] %s19
      %s21 = sshll.u32 [#allocation2], 4
      %s22 = int_to_ptr.vmem [resolvable:$true] %s21
      %24 = dma.hbm_to_vmem [thread:$0]  %s20, 128, %s22, [#allocation3]
    $region5: #{tpu_custom_call.1} parent=1 // pred_fallthru
      _
    // Predicated region
    $region6: #{tpu_custom_call.1} parent=1 // pred_check
      _
    $region7: #{tpu_custom_call.1} parent=1 // pred_check_branch
      %26 = sbr.rel (0) target = $region9
    $region8: #{tpu_custom_call.1} parent=1 // pred_region
      %28 = vsyncadd [#allocation6], 0
      %s29 = sshll.u32 %s1, 4
      %s30 = int_to_ptr.hbm [resolvable:$true] %s29
      %s31 = sshll.u32 [#allocation5], 4
      %s32 = int_to_ptr.vmem [resolvable:$true] %s31
      %37 = dma.hbm_to_vmem [thread:$0]  %s30, 2048, %s32, [#allocation6], 128, 128, 8
    $region9: #{tpu_custom_call.1} parent=1 // pred_fallthru
      _
    // Predicated region
    $region10: #{tpu_custom_call.1} parent=1 // pred_check
      _
    $region11: #{tpu_custom_call.1} parent=1 // pred_check_branch
      %39 = sbr.rel (0) target = $region13
    $region12: #{tpu_custom_call.1} parent=1 // pred_region
      %41 = vsyncadd [#allocation6], 0
      %s42 = sshll.u32 %s2, 4
      %s43 = int_to_ptr.hbm [resolvable:$true] %s42
      %s44 = sshll.u32 [#allocation7], 4
      %s45 = int_to_ptr.vmem [resolvable:$true] %s44
      %50 = dma.hbm_to_vmem [thread:$0]  %s43, 8192, %s45, [#allocation6], 128, 128, 8
    $region13: #{tpu_custom_call.1} parent=1 // pred_fallthru
      _
    // Predicated region
    $region14: #{tpu_custom_call.1} parent=1 // pred_check
      _
    $region15: #{tpu_custom_call.1} parent=1 // pred_check_branch
      %52 = sbr.rel (0) target = $region17
    $region16: #{tpu_custom_call.1} parent=1 // pred_region
      %54 = vsyncadd [#allocation9], 0
      %s55 = sshll.u32 %s3, 4
      %s56 = int_to_ptr.hbm [resolvable:$true] %s55
      %s57 = sshll.u32 [#allocation8], 4
      %s58 = int_to_ptr.vmem [resolvable:$true] %s57
      %63 = dma.hbm_to_vmem [thread:$0]  %s56, 2048, %s58, [#allocation9], 64, 64, 4
    $region17: #{tpu_custom_call.1} parent=1 // pred_fallthru
      _
    // Predicated region
    $region18: #{tpu_custom_call.1} parent=1 // pred_check
      _
    $region19: #{tpu_custom_call.1} parent=1 // pred_check_branch
      %65 = sbr.rel (0) target = $region21
    $region20: #{tpu_custom_call.1} parent=1 // pred_region
      %67 = vsyncadd [#allocation9], 0
      %s69 = sshll.u32 %s4, 4
      %s70 = int_to_ptr.hbm [resolvable:$true] %s69
      %s71 = sshll.u32 [#allocation10], 4
      %s72 = int_to_ptr.vmem [resolvable:$true] %s71
      %74 = dma.hbm_to_vmem [thread:$0]  %s70, 256, %s72, [#allocation9]
    $region21: #{tpu_custom_call.1} parent=1 // pred_fallthru
      _
    // Predicated region
    $region22: #{tpu_custom_call.1} parent=1 // pred_check
      _
    $region23: #{tpu_custom_call.1} parent=1 // pred_check_branch
      %76 = sbr.rel (0) target = $region25
    $region24: #{tpu_custom_call.1} parent=1 // pred_region
      %78 = dma.done [#allocation3], 128
    $region25: #{tpu_custom_call.1} parent=1 // pred_fallthru
      _
    // Predicated region
    $region26: #{tpu_custom_call.1} parent=1 // pred_check
      _
    $region27: #{tpu_custom_call.1} parent=1 // pred_check_branch
      %80 = sbr.rel (0) target = $region29
    $region28: #{tpu_custom_call.1} parent=1 // pred_region
      %82 = dma.done [#allocation6], 2048
    $region29: #{tpu_custom_call.1} parent=1 // pred_fallthru
      _
    // Predicated region
    $region30: #{tpu_custom_call.1} parent=1 // pred_check
      _
    $region31: #{tpu_custom_call.1} parent=1 // pred_check_branch
      %84 = sbr.rel (0) target = $region33
    $region32: #{tpu_custom_call.1} parent=1 // pred_region
      %86 = dma.done [#allocation6], 8192
    $region33: #{tpu_custom_call.1} parent=1 // pred_fallthru
      _
    // Predicated region
    $region34: #{tpu_custom_call.1} parent=1 // pred_check
      _
    $region35: #{tpu_custom_call.1} parent=1 // pred_check_branch
      %88 = sbr.rel (0) target = $region37
    $region36: #{tpu_custom_call.1} parent=1 // pred_region
      %90 = dma.done [#allocation9], 2048
    $region37: #{tpu_custom_call.1} parent=1 // pred_fallthru
      _
    // Predicated region
    $region38: #{tpu_custom_call.1} parent=1 // pred_check
      _
    $region39: #{tpu_custom_call.1} parent=1 // pred_check_branch
      %92 = sbr.rel (0) target = $region41
    $region40: #{tpu_custom_call.1} parent=1 // pred_region
      %94 = dma.done [#allocation9], 256
    $region41: #{tpu_custom_call.1} parent=1 // pred_fallthru
      _
    %v95 = vld [vmem:[#allocation2] sm:$0xff]
    %v96 = vpack.c.bf16 %v95, %v95
    %v97 = vld [vmem:[#allocation5] sm:$0xff]
    %v98 = vld [vmem:[#allocation5 + $0x8] sm:$0xff]
    %v99 = vld [vmem:[#allocation5 + $0x10] sm:$0xff]
    %v100 = vld [vmem:[#allocation5 + $0x18] sm:$0xff]
    %v101 = vld [vmem:[#allocation5 + $0x20] sm:$0xff]
    %v102 = vld [vmem:[#allocation5 + $0x28] sm:$0xff]
    %v103 = vld [vmem:[#allocation5 + $0x30] sm:$0xff]
    %v104 = vld [vmem:[#allocation5 + $0x38] sm:$0xff]
    %v105 = vld [vmem:[#allocation5 + $0x40] sm:$0xff]
    %v106 = vld [vmem:[#allocation5 + $0x48] sm:$0xff]
    %v107 = vld [vmem:[#allocation5 + $0x50] sm:$0xff]
    %v108 = vld [vmem:[#allocation5 + $0x58] sm:$0xff]
    %v109 = vld [vmem:[#allocation5 + $0x60] sm:$0xff]
    %v110 = vld [vmem:[#allocation5 + $0x68] sm:$0xff]
    %v111 = vld [vmem:[#allocation5 + $0x70] sm:$0xff]
    %v112 = vld [vmem:[#allocation5 + $0x78] sm:$0xff]
    %v113 = vld [vmem:[#allocation10] ss:$8 sm:$0x3]
    %v115 = vperm.slane %v113, 0
    %v116 = vperm.slane %v113, 1
    %v135 = vunpack.c.l.b16 %v97
    %v136 = vunpack.c.h.b16 %v97
    %v137 = vunpack.c.l.b16 %v98
    %v138 = vunpack.c.h.b16 %v98
    %v139 = vunpack.c.l.b16 %v99
    %v140 = vunpack.c.h.b16 %v99
    %v141 = vunpack.c.l.b16 %v100
    %v142 = vunpack.c.h.b16 %v100
    %v143 = vunpack.c.l.b16 %v101
    %v144 = vunpack.c.h.b16 %v101
    %v145 = vunpack.c.l.b16 %v102
    %v146 = vunpack.c.h.b16 %v102
    %v147 = vunpack.c.l.b16 %v103
    %v148 = vunpack.c.h.b16 %v103
    %v149 = vunpack.c.l.b16 %v104
    %v150 = vunpack.c.h.b16 %v104
    %v151 = vunpack.c.l.b16 %v105
    %v152 = vunpack.c.h.b16 %v105
    %v153 = vunpack.c.l.b16 %v106
    %v154 = vunpack.c.h.b16 %v106
    %v155 = vunpack.c.l.b16 %v107
    %v156 = vunpack.c.h.b16 %v107
    %v157 = vunpack.c.l.b16 %v108
    %v158 = vunpack.c.h.b16 %v108
    %v159 = vunpack.c.l.b16 %v109
    %v160 = vunpack.c.h.b16 %v109
    %v161 = vunpack.c.l.b16 %v110
    %v162 = vunpack.c.h.b16 %v110
    %v163 = vunpack.c.l.b16 %v111
    %v164 = vunpack.c.h.b16 %v111
    %v165 = vunpack.c.l.b16 %v112
    %v166 = vunpack.c.h.b16 %v112
    %v167 = vpack.c.b16 %v137, %v135
    %v168 = vpack.c.b16 %v138, %v136
    %v169 = vpack.c.b16 %v141, %v139
    %v170 = vpack.c.b16 %v142, %v140
    %v171 = vpack.c.b16 %v145, %v143
    %v172 = vpack.c.b16 %v146, %v144
    %v173 = vpack.c.b16 %v149, %v147
    %v174 = vpack.c.b16 %v150, %v148
    %v175 = vpack.c.b16 %v153, %v151
    %v176 = vpack.c.b16 %v154, %v152
    %v177 = vpack.c.b16 %v157, %v155
    %v178 = vpack.c.b16 %v158, %v156
    %v179 = vpack.c.b16 %v161, %v159
    %v180 = vpack.c.b16 %v162, %v160
    %v181 = vpack.c.b16 %v165, %v163
    %v182 = vpack.c.b16 %v166, %v164
    %199 = vmatpush.bf16.msra.mxu0 %v181
    %200 = vmatpush.bf16.msra.mxu0 %v179
    %201 = vmatpush.bf16.msra.mxu0 %v177
    %202 = vmatpush.bf16.msra.mxu0 %v175
    %203 = vmatpush.bf16.msra.mxu0 %v173
    %204 = vmatpush.bf16.msra.mxu0 %v171
    %205 = vmatpush.bf16.msra.mxu0 %v169
    %206 = vmatpush.bf16.msra.mxu0 %v167
    %207 = vmatmul.bf16.gmra.mxu0 %v96
    %v208 = vpop.f32.mrf.mxu0
    %v209 = vadd.f32 %v115, %v208
    %v210 = vpop.f32.mrf.mxu0
    %211 = vdwg.mxu0
    %212 = vmatpush.bf16.msra.mxu0 %v182
    %213 = vmatpush.bf16.msra.mxu0 %v180
    %214 = vmatpush.bf16.msra.mxu0 %v178
    %215 = vmatpush.bf16.msra.mxu0 %v176
    %216 = vmatpush.bf16.msra.mxu0 %v174
    %217 = vmatpush.bf16.msra.mxu0 %v172
    %218 = vmatpush.bf16.msra.mxu0 %v170
    %219 = vmatpush.bf16.msra.mxu0 %v168
    %220 = vmatmul.bf16.gmra.mxu0 %v96
    %v221 = vpop.f32.mrf.mxu0
    %v222 = vadd.f32 %v116, %v221
    %v223 = vpop.f32.mrf.mxu0
    %224 = vdwg.mxu0
    %v225 = vtanh.pop %v209
    %v226 = vtanh.pop %v222
    %v227 = vpack.c.bf16 %v225, %v225
    %v228 = vpack.c.bf16 %v226, %v226
    %v229 = vld [vmem:[#allocation7] sm:$0xff]
    %v230 = vld [vmem:[#allocation7 + $0x8] sm:$0xff]
    %v231 = vld [vmem:[#allocation7 + $0x10] sm:$0xff]
    %v232 = vld [vmem:[#allocation7 + $0x18] sm:$0xff]
    %v233 = vld [vmem:[#allocation7 + $0x20] sm:$0xff]
    %v234 = vld [vmem:[#allocation7 + $0x28] sm:$0xff]
    %v235 = vld [vmem:[#allocation7 + $0x30] sm:$0xff]
    %v236 = vld [vmem:[#allocation7 + $0x38] sm:$0xff]
    %v237 = vld [vmem:[#allocation7 + $0x40] sm:$0xff]
    %v238 = vld [vmem:[#allocation7 + $0x48] sm:$0xff]
    %v239 = vld [vmem:[#allocation7 + $0x50] sm:$0xff]
    %v240 = vld [vmem:[#allocation7 + $0x58] sm:$0xff]
    %v241 = vld [vmem:[#allocation7 + $0x60] sm:$0xff]
    %v242 = vld [vmem:[#allocation7 + $0x68] sm:$0xff]
    %v243 = vld [vmem:[#allocation7 + $0x70] sm:$0xff]
    %v244 = vld [vmem:[#allocation7 + $0x78] sm:$0xff]
    %v245 = vld [vmem:[#allocation7 + $0x80] sm:$0xff]
    %v246 = vld [vmem:[#allocation7 + $0x88] sm:$0xff]
    %v247 = vld [vmem:[#allocation7 + $0x90] sm:$0xff]
    %v248 = vld [vmem:[#allocation7 + $0x98] sm:$0xff]
    %v249 = vld [vmem:[#allocation7 + $0xa0] sm:$0xff]
    %v250 = vld [vmem:[#allocation7 + $0xa8] sm:$0xff]
    %v251 = vld [vmem:[#allocation7 + $0xb0] sm:$0xff]
    %v252 = vld [vmem:[#allocation7 + $0xb8] sm:$0xff]
    %v253 = vld [vmem:[#allocation7 + $0xc0] sm:$0xff]
    %v254 = vld [vmem:[#allocation7 + $0xc8] sm:$0xff]
    %v255 = vld [vmem:[#allocation7 + $0xd0] sm:$0xff]
    %v256 = vld [vmem:[#allocation7 + $0xd8] sm:$0xff]
    %v257 = vld [vmem:[#allocation7 + $0xe0] sm:$0xff]
    %v258 = vld [vmem:[#allocation7 + $0xe8] sm:$0xff]
    %v259 = vld [vmem:[#allocation7 + $0xf0] sm:$0xff]
    %v260 = vld [vmem:[#allocation7 + $0xf8] sm:$0xff]
    %s261 = scalar_lea.vmem [#allocation10], 1
    %v262 = vld [vmem:[%s261] ss:$8 sm:$0x3]
    %v264 = vperm.slane %v262, 0
    %v265 = vperm.slane %v262, 1
    %v300 = vunpack.c.l.b16 %v229
    %v301 = vunpack.c.h.b16 %v229
    %v302 = vunpack.c.l.b16 %v230
    %v303 = vunpack.c.h.b16 %v230
    %v304 = vunpack.c.l.b16 %v231
    %v305 = vunpack.c.h.b16 %v231
    %v306 = vunpack.c.l.b16 %v232
    %v307 = vunpack.c.h.b16 %v232
    %v308 = vunpack.c.l.b16 %v233
    %v309 = vunpack.c.h.b16 %v233
    %v310 = vunpack.c.l.b16 %v234
    %v311 = vunpack.c.h.b16 %v234
    %v312 = vunpack.c.l.b16 %v235
    %v313 = vunpack.c.h.b16 %v235
    %v314 = vunpack.c.l.b16 %v236
    %v315 = vunpack.c.h.b16 %v236
    %v316 = vunpack.c.l.b16 %v237
    %v317 = vunpack.c.h.b16 %v237
    %v318 = vunpack.c.l.b16 %v238
    %v319 = vunpack.c.h.b16 %v238
    %v320 = vunpack.c.l.b16 %v239
    %v321 = vunpack.c.h.b16 %v239
    %v322 = vunpack.c.l.b16 %v240
    %v323 = vunpack.c.h.b16 %v240
    %v324 = vunpack.c.l.b16 %v241
    %v325 = vunpack.c.h.b16 %v241
    %v326 = vunpack.c.l.b16 %v242
    %v327 = vunpack.c.h.b16 %v242
    %v328 = vunpack.c.l.b16 %v243
    %v329 = vunpack.c.h.b16 %v243
    %v330 = vunpack.c.l.b16 %v244
    %v331 = vunpack.c.h.b16 %v244
    %v332 = vunpack.c.l.b16 %v245
    %v333 = vunpack.c.h.b16 %v245
    %v334 = vunpack.c.l.b16 %v246
    %v335 = vunpack.c.h.b16 %v246
    %v336 = vunpack.c.l.b16 %v247
    %v337 = vunpack.c.h.b16 %v247
    %v338 = vunpack.c.l.b16 %v248
    %v339 = vunpack.c.h.b16 %v248
    %v340 = vunpack.c.l.b16 %v249
    %v341 = vunpack.c.h.b16 %v249
    %v342 = vunpack.c.l.b16 %v250
    %v343 = vunpack.c.h.b16 %v250
    %v344 = vunpack.c.l.b16 %v251
    %v345 = vunpack.c.h.b16 %v251
    %v346 = vunpack.c.l.b16 %v252
    %v347 = vunpack.c.h.b16 %v252
    %v348 = vunpack.c.l.b16 %v253
    %v349 = vunpack.c.h.b16 %v253
    %v350 = vunpack.c.l.b16 %v254
    %v351 = vunpack.c.h.b16 %v254
    %v352 = vunpack.c.l.b16 %v255
    %v353 = vunpack.c.h.b16 %v255
    %v354 = vunpack.c.l.b16 %v256
    %v355 = vunpack.c.h.b16 %v256
    %v356 = vunpack.c.l.b16 %v257
    %v357 = vunpack.c.h.b16 %v257
    %v358 = vunpack.c.l.b16 %v258
    %v359 = vunpack.c.h.b16 %v258
    %v360 = vunpack.c.l.b16 %v259
    %v361 = vunpack.c.h.b16 %v259
    %v362 = vunpack.c.l.b16 %v260
    %v363 = vunpack.c.h.b16 %v260
    %v364 = vpack.c.b16 %v302, %v300
    %v365 = vpack.c.b16 %v303, %v301
    %v366 = vpack.c.b16 %v306, %v304
    %v367 = vpack.c.b16 %v307, %v305
    %v368 = vpack.c.b16 %v310, %v308
    %v369 = vpack.c.b16 %v311, %v309
    %v370 = vpack.c.b16 %v314, %v312
    %v371 = vpack.c.b16 %v315, %v313
    %v372 = vpack.c.b16 %v318, %v316
    %v373 = vpack.c.b16 %v319, %v317
    %v374 = vpack.c.b16 %v322, %v320
    %v375 = vpack.c.b16 %v323, %v321
    %v376 = vpack.c.b16 %v326, %v324
    %v377 = vpack.c.b16 %v327, %v325
    %v378 = vpack.c.b16 %v330, %v328
    %v379 = vpack.c.b16 %v331, %v329
    %v380 = vpack.c.b16 %v334, %v332
    %v381 = vpack.c.b16 %v335, %v333
    %v382 = vpack.c.b16 %v338, %v336
    %v383 = vpack.c.b16 %v339, %v337
    %v384 = vpack.c.b16 %v342, %v340
    %v385 = vpack.c.b16 %v343, %v341
    %v386 = vpack.c.b16 %v346, %v344
    %v387 = vpack.c.b16 %v347, %v345
    %v388 = vpack.c.b16 %v350, %v348
    %v389 = vpack.c.b16 %v351, %v349
    %v390 = vpack.c.b16 %v354, %v352
    %v391 = vpack.c.b16 %v355, %v353
    %v392 = vpack.c.b16 %v358, %v356
    %v393 = vpack.c.b16 %v359, %v357
    %v394 = vpack.c.b16 %v362, %v360
    %v395 = vpack.c.b16 %v363, %v361
    %428 = vmatpush.bf16.msra.mxu0 %v378
    %429 = vmatpush.bf16.msra.mxu0 %v376
    %430 = vmatpush.bf16.msra.mxu0 %v374
    %431 = vmatpush.bf16.msra.mxu0 %v372
    %432 = vmatpush.bf16.msra.mxu0 %v370
    %433 = vmatpush.bf16.msra.mxu0 %v368
    %434 = vmatpush.bf16.msra.mxu0 %v366
    %435 = vmatpush.bf16.msra.mxu0 %v364
    %436 = vmatmul.bf16.gmra.mxu0 %v227
    %v437 = vpop.f32.mrf.mxu0
    %v438 = vadd.f32 %v264, %v437
    %v439 = vpop.f32.mrf.mxu0
    %440 = vdwg.mxu0
    %441 = vmatpush.bf16.msra.mxu0 %v394
    %442 = vmatpush.bf16.msra.mxu0 %v392
    %443 = vmatpush.bf16.msra.mxu0 %v390
    %444 = vmatpush.bf16.msra.mxu0 %v388
    %445 = vmatpush.bf16.msra.mxu0 %v386
    %446 = vmatpush.bf16.msra.mxu0 %v384
    %447 = vmatpush.bf16.msra.mxu0 %v382
    %448 = vmatpush.bf16.msra.mxu0 %v380
    %449 = vmatmul.bf16.gmra.mxu0 %v228
    %v450 = vpop.f32.mrf.mxu0
    %v451 = vadd.f32 %v438, %v450
    %v452 = vpop.f32.mrf.mxu0
    %453 = vdwg.mxu0
    %454 = vmatpush.bf16.msra.mxu0 %v379
    %455 = vmatpush.bf16.msra.mxu0 %v377
    %456 = vmatpush.bf16.msra.mxu0 %v375
    %457 = vmatpush.bf16.msra.mxu0 %v373
    %458 = vmatpush.bf16.msra.mxu0 %v371
    %459 = vmatpush.bf16.msra.mxu0 %v369
    %460 = vmatpush.bf16.msra.mxu0 %v367
    %461 = vmatpush.bf16.msra.mxu0 %v365
    %462 = vmatmul.bf16.gmra.mxu0 %v227
    %v463 = vpop.f32.mrf.mxu0
    %v464 = vadd.f32 %v265, %v463
    %v465 = vpop.f32.mrf.mxu0
    %466 = vdwg.mxu0
    %467 = vmatpush.bf16.msra.mxu0 %v395
    %468 = vmatpush.bf16.msra.mxu0 %v393
    %469 = vmatpush.bf16.msra.mxu0 %v391
    %470 = vmatpush.bf16.msra.mxu0 %v389
    %471 = vmatpush.bf16.msra.mxu0 %v387
    %472 = vmatpush.bf16.msra.mxu0 %v385
    %473 = vmatpush.bf16.msra.mxu0 %v383
    %474 = vmatpush.bf16.msra.mxu0 %v381
    %475 = vmatmul.bf16.gmra.mxu0 %v228
    %v476 = vpop.f32.mrf.mxu0
    %v477 = vadd.f32 %v464, %v476
    %v478 = vpop.f32.mrf.mxu0
    %479 = vdwg.mxu0
    %v480 = vtanh.pop %v451
    %v481 = vtanh.pop %v477
    %v482 = vpack.c.bf16 %v480, %v480
    %v483 = vpack.c.bf16 %v481, %v481
    %s484 = scalar_lea.vmem [#allocation7], 256
    %v485 = vld [vmem:[%s484] sm:$0xff]
    %v486 = vld [vmem:[%s484 + $0x8] sm:$0xff]
    %v487 = vld [vmem:[%s484 + $0x10] sm:$0xff]
    %v488 = vld [vmem:[%s484 + $0x18] sm:$0xff]
    %v489 = vld [vmem:[%s484 + $0x20] sm:$0xff]
    %v490 = vld [vmem:[%s484 + $0x28] sm:$0xff]
    %v491 = vld [vmem:[%s484 + $0x30] sm:$0xff]
    %v492 = vld [vmem:[%s484 + $0x38] sm:$0xff]
    %v493 = vld [vmem:[%s484 + $0x40] sm:$0xff]
    %v494 = vld [vmem:[%s484 + $0x48] sm:$0xff]
    %v495 = vld [vmem:[%s484 + $0x50] sm:$0xff]
    %v496 = vld [vmem:[%s484 + $0x58] sm:$0xff]
    %v497 = vld [vmem:[%s484 + $0x60] sm:$0xff]
    %v498 = vld [vmem:[%s484 + $0x68] sm:$0xff]
    %v499 = vld [vmem:[%s484 + $0x70] sm:$0xff]
    %v500 = vld [vmem:[%s484 + $0x78] sm:$0xff]
    %v501 = vld [vmem:[%s484 + $0x80] sm:$0xff]
    %v502 = vld [vmem:[%s484 + $0x88] sm:$0xff]
    %v503 = vld [vmem:[%s484 + $0x90] sm:$0xff]
    %v504 = vld [vmem:[%s484 + $0x98] sm:$0xff]
    %v505 = vld [vmem:[%s484 + $0xa0] sm:$0xff]
    %v506 = vld [vmem:[%s484 + $0xa8] sm:$0xff]
    %v507 = vld [vmem:[%s484 + $0xb0] sm:$0xff]
    %v508 = vld [vmem:[%s484 + $0xb8] sm:$0xff]
    %v509 = vld [vmem:[%s484 + $0xc0] sm:$0xff]
    %v510 = vld [vmem:[%s484 + $0xc8] sm:$0xff]
    %v511 = vld [vmem:[%s484 + $0xd0] sm:$0xff]
    %v512 = vld [vmem:[%s484 + $0xd8] sm:$0xff]
    %v513 = vld [vmem:[%s484 + $0xe0] sm:$0xff]
    %v514 = vld [vmem:[%s484 + $0xe8] sm:$0xff]
    %v515 = vld [vmem:[%s484 + $0xf0] sm:$0xff]
    %v516 = vld [vmem:[%s484 + $0xf8] sm:$0xff]
    %s517 = scalar_lea.vmem [#allocation10], 2
    %v518 = vld [vmem:[%s517] ss:$8 sm:$0x3]
    %v520 = vperm.slane %v518, 0
    %v521 = vperm.slane %v518, 1
    %v556 = vunpack.c.l.b16 %v485
    %v557 = vunpack.c.h.b16 %v485
    %v558 = vunpack.c.l.b16 %v486
    %v559 = vunpack.c.h.b16 %v486
    %v560 = vunpack.c.l.b16 %v487
    %v561 = vunpack.c.h.b16 %v487
    %v562 = vunpack.c.l.b16 %v488
    %v563 = vunpack.c.h.b16 %v488
    %v564 = vunpack.c.l.b16 %v489
    %v565 = vunpack.c.h.b16 %v489
    %v566 = vunpack.c.l.b16 %v490
    %v567 = vunpack.c.h.b16 %v490
    %v568 = vunpack.c.l.b16 %v491
    %v569 = vunpack.c.h.b16 %v491
    %v570 = vunpack.c.l.b16 %v492
    %v571 = vunpack.c.h.b16 %v492
    %v572 = vunpack.c.l.b16 %v493
    %v573 = vunpack.c.h.b16 %v493
    %v574 = vunpack.c.l.b16 %v494
    %v575 = vunpack.c.h.b16 %v494
    %v576 = vunpack.c.l.b16 %v495
    %v577 = vunpack.c.h.b16 %v495
    %v578 = vunpack.c.l.b16 %v496
    %v579 = vunpack.c.h.b16 %v496
    %v580 = vunpack.c.l.b16 %v497
    %v581 = vunpack.c.h.b16 %v497
    %v582 = vunpack.c.l.b16 %v498
    %v583 = vunpack.c.h.b16 %v498
    %v584 = vunpack.c.l.b16 %v499
    %v585 = vunpack.c.h.b16 %v499
    %v586 = vunpack.c.l.b16 %v500
    %v587 = vunpack.c.h.b16 %v500
    %v588 = vunpack.c.l.b16 %v501
    %v589 = vunpack.c.h.b16 %v501
    %v590 = vunpack.c.l.b16 %v502
    %v591 = vunpack.c.h.b16 %v502
    %v592 = vunpack.c.l.b16 %v503
    %v593 = vunpack.c.h.b16 %v503
    %v594 = vunpack.c.l.b16 %v504
    %v595 = vunpack.c.h.b16 %v504
    %v596 = vunpack.c.l.b16 %v505
    %v597 = vunpack.c.h.b16 %v505
    %v598 = vunpack.c.l.b16 %v506
    %v599 = vunpack.c.h.b16 %v506
    %v600 = vunpack.c.l.b16 %v507
    %v601 = vunpack.c.h.b16 %v507
    %v602 = vunpack.c.l.b16 %v508
    %v603 = vunpack.c.h.b16 %v508
    %v604 = vunpack.c.l.b16 %v509
    %v605 = vunpack.c.h.b16 %v509
    %v606 = vunpack.c.l.b16 %v510
    %v607 = vunpack.c.h.b16 %v510
    %v608 = vunpack.c.l.b16 %v511
    %v609 = vunpack.c.h.b16 %v511
    %v610 = vunpack.c.l.b16 %v512
    %v611 = vunpack.c.h.b16 %v512
    %v612 = vunpack.c.l.b16 %v513
    %v613 = vunpack.c.h.b16 %v513
    %v614 = vunpack.c.l.b16 %v514
    %v615 = vunpack.c.h.b16 %v514
    %v616 = vunpack.c.l.b16 %v515
    %v617 = vunpack.c.h.b16 %v515
    %v618 = vunpack.c.l.b16 %v516
    %v619 = vunpack.c.h.b16 %v516
    %v620 = vpack.c.b16 %v558, %v556
    %v621 = vpack.c.b16 %v559, %v557
    %v622 = vpack.c.b16 %v562, %v560
    %v623 = vpack.c.b16 %v563, %v561
    %v624 = vpack.c.b16 %v566, %v564
    %v625 = vpack.c.b16 %v567, %v565
    %v626 = vpack.c.b16 %v570, %v568
    %v627 = vpack.c.b16 %v571, %v569
    %v628 = vpack.c.b16 %v574, %v572
    %v629 = vpack.c.b16 %v575, %v573
    %v630 = vpack.c.b16 %v578, %v576
    %v631 = vpack.c.b16 %v579, %v577
    %v632 = vpack.c.b16 %v582, %v580
    %v633 = vpack.c.b16 %v583, %v581
    %v634 = vpack.c.b16 %v586, %v584
    %v635 = vpack.c.b16 %v587, %v585
    %v636 = vpack.c.b16 %v590, %v588
    %v637 = vpack.c.b16 %v591, %v589
    %v638 = vpack.c.b16 %v594, %v592
    %v639 = vpack.c.b16 %v595, %v593
    %v640 = vpack.c.b16 %v598, %v596
    %v641 = vpack.c.b16 %v599, %v597
    %v642 = vpack.c.b16 %v602, %v600
    %v643 = vpack.c.b16 %v603, %v601
    %v644 = vpack.c.b16 %v606, %v604
    %v645 = vpack.c.b16 %v607, %v605
    %v646 = vpack.c.b16 %v610, %v608
    %v647 = vpack.c.b16 %v611, %v609
    %v648 = vpack.c.b16 %v614, %v612
    %v649 = vpack.c.b16 %v615, %v613
    %v650 = vpack.c.b16 %v618, %v616
    %v651 = vpack.c.b16 %v619, %v617
    %684 = vmatpush.bf16.msra.mxu0 %v634
    %685 = vmatpush.bf16.msra.mxu0 %v632
    %686 = vmatpush.bf16.msra.mxu0 %v630
    %687 = vmatpush.bf16.msra.mxu0 %v628
    %688 = vmatpush.bf16.msra.mxu0 %v626
    %689 = vmatpush.bf16.msra.mxu0 %v624
    %690 = vmatpush.bf16.msra.mxu0 %v622
    %691 = vmatpush.bf16.msra.mxu0 %v620
    %692 = vmatmul.bf16.gmra.mxu0 %v482
    %v693 = vpop.f32.mrf.mxu0
    %v694 = vadd.f32 %v520, %v693
    %v695 = vpop.f32.mrf.mxu0
    %696 = vdwg.mxu0
    %697 = vmatpush.bf16.msra.mxu0 %v650
    %698 = vmatpush.bf16.msra.mxu0 %v648
    %699 = vmatpush.bf16.msra.mxu0 %v646
    %700 = vmatpush.bf16.msra.mxu0 %v644
    %701 = vmatpush.bf16.msra.mxu0 %v642
    %702 = vmatpush.bf16.msra.mxu0 %v640
    %703 = vmatpush.bf16.msra.mxu0 %v638
    %704 = vmatpush.bf16.msra.mxu0 %v636
    %705 = vmatmul.bf16.gmra.mxu0 %v483
    %v706 = vpop.f32.mrf.mxu0
    %v707 = vadd.f32 %v694, %v706
    %v708 = vpop.f32.mrf.mxu0
    %709 = vdwg.mxu0
    %710 = vmatpush.bf16.msra.mxu0 %v635
    %711 = vmatpush.bf16.msra.mxu0 %v633
    %712 = vmatpush.bf16.msra.mxu0 %v631
    %713 = vmatpush.bf16.msra.mxu0 %v629
    %714 = vmatpush.bf16.msra.mxu0 %v627
    %715 = vmatpush.bf16.msra.mxu0 %v625
    %716 = vmatpush.bf16.msra.mxu0 %v623
    %717 = vmatpush.bf16.msra.mxu0 %v621
    %718 = vmatmul.bf16.gmra.mxu0 %v482
    %v719 = vpop.f32.mrf.mxu0
    %v720 = vadd.f32 %v521, %v719
    %v721 = vpop.f32.mrf.mxu0
    %722 = vdwg.mxu0
    %723 = vmatpush.bf16.msra.mxu0 %v651
    %724 = vmatpush.bf16.msra.mxu0 %v649
    %725 = vmatpush.bf16.msra.mxu0 %v647
    %726 = vmatpush.bf16.msra.mxu0 %v645
    %727 = vmatpush.bf16.msra.mxu0 %v643
    %728 = vmatpush.bf16.msra.mxu0 %v641
    %729 = vmatpush.bf16.msra.mxu0 %v639
    %730 = vmatpush.bf16.msra.mxu0 %v637
    %731 = vmatmul.bf16.gmra.mxu0 %v483
    %v732 = vpop.f32.mrf.mxu0
    %v733 = vadd.f32 %v720, %v732
    %v734 = vpop.f32.mrf.mxu0
    %735 = vdwg.mxu0
    %v736 = vtanh.pop %v707
    %v737 = vtanh.pop %v733
    %v738 = vpack.c.bf16 %v736, %v736
    %v739 = vpack.c.bf16 %v737, %v737
    %v740 = vld [vmem:[#allocation8] sm:$0xf]
    %v741 = vld [vmem:[#allocation8 + $0x4] sm:$0xf]
    %v742 = vld [vmem:[#allocation8 + $0x8] sm:$0xf]
    %v743 = vld [vmem:[#allocation8 + $0xc] sm:$0xf]
    %v744 = vld [vmem:[#allocation8 + $0x10] sm:$0xf]
    %v745 = vld [vmem:[#allocation8 + $0x14] sm:$0xf]
    %v746 = vld [vmem:[#allocation8 + $0x18] sm:$0xf]
    %v747 = vld [vmem:[#allocation8 + $0x1c] sm:$0xf]
    %v748 = vld [vmem:[#allocation8 + $0x20] sm:$0xf]
    %v749 = vld [vmem:[#allocation8 + $0x24] sm:$0xf]
    %v750 = vld [vmem:[#allocation8 + $0x28] sm:$0xf]
    %v751 = vld [vmem:[#allocation8 + $0x2c] sm:$0xf]
    %v752 = vld [vmem:[#allocation8 + $0x30] sm:$0xf]
    %v753 = vld [vmem:[#allocation8 + $0x34] sm:$0xf]
    %v754 = vld [vmem:[#allocation8 + $0x38] sm:$0xf]
    %v755 = vld [vmem:[#allocation8 + $0x3c] sm:$0xf]
    %v756 = vld [vmem:[#allocation8 + $0x40] sm:$0xf]
    %v757 = vld [vmem:[#allocation8 + $0x44] sm:$0xf]
    %v758 = vld [vmem:[#allocation8 + $0x48] sm:$0xf]
    %v759 = vld [vmem:[#allocation8 + $0x4c] sm:$0xf]
    %v760 = vld [vmem:[#allocation8 + $0x50] sm:$0xf]
    %v761 = vld [vmem:[#allocation8 + $0x54] sm:$0xf]
    %v762 = vld [vmem:[#allocation8 + $0x58] sm:$0xf]
    %v763 = vld [vmem:[#allocation8 + $0x5c] sm:$0xf]
    %v764 = vld [vmem:[#allocation8 + $0x60] sm:$0xf]
    %v765 = vld [vmem:[#allocation8 + $0x64] sm:$0xf]
    %v766 = vld [vmem:[#allocation8 + $0x68] sm:$0xf]
    %v767 = vld [vmem:[#allocation8 + $0x6c] sm:$0xf]
    %v768 = vld [vmem:[#allocation8 + $0x70] sm:$0xf]
    %v769 = vld [vmem:[#allocation8 + $0x74] sm:$0xf]
    %v770 = vld [vmem:[#allocation8 + $0x78] sm:$0xf]
    %v771 = vld [vmem:[#allocation8 + $0x7c] sm:$0xf]
    %v772 = vld [vmem:[#allocation10 + $0x3] ss:$0 sm:$0xff]
    %v805 = vunpack.c.l.b16 %v740
    %v806 = vunpack.c.l.b16 %v741
    %v807 = vunpack.c.l.b16 %v742
    %v808 = vunpack.c.l.b16 %v743
    %v809 = vunpack.c.l.b16 %v744
    %v810 = vunpack.c.l.b16 %v745
    %v811 = vunpack.c.l.b16 %v746
    %v812 = vunpack.c.l.b16 %v747
    %v813 = vunpack.c.l.b16 %v748
    %v814 = vunpack.c.l.b16 %v749
    %v815 = vunpack.c.l.b16 %v750
    %v816 = vunpack.c.l.b16 %v751
    %v817 = vunpack.c.l.b16 %v752
    %v818 = vunpack.c.l.b16 %v753
    %v819 = vunpack.c.l.b16 %v754
    %v820 = vunpack.c.l.b16 %v755
    %v821 = vunpack.c.l.b16 %v756
    %v822 = vunpack.c.l.b16 %v757
    %v823 = vunpack.c.l.b16 %v758
    %v824 = vunpack.c.l.b16 %v759
    %v825 = vunpack.c.l.b16 %v760
    %v826 = vunpack.c.l.b16 %v761
    %v827 = vunpack.c.l.b16 %v762
    %v828 = vunpack.c.l.b16 %v763
    %v829 = vunpack.c.l.b16 %v764
    %v830 = vunpack.c.l.b16 %v765
    %v831 = vunpack.c.l.b16 %v766
    %v832 = vunpack.c.l.b16 %v767
    %v833 = vunpack.c.l.b16 %v768
    %v834 = vunpack.c.l.b16 %v769
    %v835 = vunpack.c.l.b16 %v770
    %v836 = vunpack.c.l.b16 %v771
    %v837 = vpack.c.b16 %v806, %v805
    %v838 = vpack.c.b16 %v808, %v807
    %v839 = vpack.c.b16 %v810, %v809
    %v840 = vpack.c.b16 %v812, %v811
    %v841 = vpack.c.b16 %v814, %v813
    %v842 = vpack.c.b16 %v816, %v815
    %v843 = vpack.c.b16 %v818, %v817
    %v844 = vpack.c.b16 %v820, %v819
    %v845 = vpack.c.b16 %v822, %v821
    %v846 = vpack.c.b16 %v824, %v823
    %v847 = vpack.c.b16 %v826, %v825
    %v848 = vpack.c.b16 %v828, %v827
    %v849 = vpack.c.b16 %v830, %v829
    %v850 = vpack.c.b16 %v832, %v831
    %v851 = vpack.c.b16 %v834, %v833
    %v852 = vpack.c.b16 %v836, %v835
    %869 = vmatpush.bf16.msra.mxu0 %v844
    %870 = vmatpush.bf16.msra.mxu0 %v843
    %871 = vmatpush.bf16.msra.mxu0 %v842
    %872 = vmatpush.bf16.msra.mxu0 %v841
    %873 = vmatpush.bf16.msra.mxu0 %v840
    %874 = vmatpush.bf16.msra.mxu0 %v839
    %875 = vmatpush.bf16.msra.mxu0 %v838
    %876 = vmatpush.bf16.msra.mxu0 %v837
    %877 = vmatmul.bf16.gmra.mxu0 %v738
    %v878 = vpop.f32.mrf.mxu0
    %v879 = vadd.f32 %v772, %v878
    %v880 = vpop.f32.mrf.mxu0
    %881 = vdwg.mxu0
    %882 = vmatpush.bf16.msra.mxu0 %v852
    %883 = vmatpush.bf16.msra.mxu0 %v851
    %884 = vmatpush.bf16.msra.mxu0 %v850
    %885 = vmatpush.bf16.msra.mxu0 %v849
    %886 = vmatpush.bf16.msra.mxu0 %v848
    %887 = vmatpush.bf16.msra.mxu0 %v847
    %888 = vmatpush.bf16.msra.mxu0 %v846
    %889 = vmatpush.bf16.msra.mxu0 %v845
    %890 = vmatmul.bf16.gmra.mxu0 %v739
    %v891 = vpop.f32.mrf.mxu0
    %v892 = vadd.f32 %v879, %v891
    %v893 = vpop.f32.mrf.mxu0
    %894 = vdwg.mxu0
    %895 = vst [vmem:[#allocation11] sm:$0xff] %v892
    // Predicated region
    $region42: #{tpu_custom_call.1} parent=1 // pred_check
      _
    $region43: #{tpu_custom_call.1} parent=1 // pred_check_branch
      %897 = sbr.rel (0) target = $region45
    $region44: #{tpu_custom_call.1} parent=1 // pred_region
      %899 = vsyncadd [#allocation4], 0
      %s901 = sshll.u32 [#allocation11], 4
      %s902 = int_to_ptr.vmem [resolvable:$true] %s901
      %s903 = sshll.u32 %s5, 4
      %s904 = int_to_ptr.hbm [resolvable:$true] %s903
      %906 = dma.vmem_to_hbm [thread:$0]  %s902, 128, %s904, [#allocation4]
    $region45: #{tpu_custom_call.1} parent=1 // pred_fallthru
      _
    // Predicated region
    $region46: #{tpu_custom_call.1} parent=1 // pred_check
      _
    $region47: #{tpu_custom_call.1} parent=1 // pred_check_branch
      %908 = sbr.rel (0) target = $region49
    $region48: #{tpu_custom_call.1} parent=1 // pred_region
      %910 = dma.done [#allocation4], 128
    $region49: #{tpu_custom_call.1} parent=1 // pred_fallthru
      _
    %911 = vsyncpa [#allocation3], 1
    %912 = vsyncpa [#allocation6], 1
    %913 = vsyncpa [#allocation9], 1
    %914 = vsyncpa [#allocation4], 1

</llo_original>
